<compile_context>
chip_gen: v6e
topology: v6e:2x2x1
jax: 0.10.0
libtpu: 0.0.40
codegen_flags: <defaults>
</compile_context>

<pallas_src>
import functools

import jax
import jax.numpy as jnp
import numpy as np
from jax.experimental import pallas as pl
from jax.experimental.pallas import tpu as pltpu


def _interp_matrix_np(n_in: int, n_out: int) -> np.ndarray:
    """(n_out, n_in) f32 matrix for 1-D bilinear interpolation with
    align_corners=True (PyTorch semantics). Built in numpy at trace time."""
    if n_in == 1:
        return np.ones((n_out, 1), dtype=np.float32)
    src = np.arange(n_out, dtype=np.float64) * (n_in - 1) / (n_out - 1)
    lo = np.clip(np.floor(src).astype(np.int64), 0, n_in - 1)
    hi = np.clip(lo + 1, 0, n_in - 1)
    frac = (src - lo).astype(np.float32)
    m = np.zeros((n_out, n_in), dtype=np.float32)
    m[np.arange(n_out), lo] += 1.0 - frac
    m[np.arange(n_out), hi] += frac
    return m


def _upsample_kernel(x_ref, ah_ref, awt_ref, o_ref):
    # x_ref:   (T, H, W)   batch of T single-channel images
    # ah_ref:  (2H, H)     row (H) interpolation matrix (f32)
    # awt_ref: (W, 2W)     column (W) interpolation matrix, pre-transposed (f32)
    # o_ref:   (T, 2H, 2W)
    t, h, w = x_ref.shape
    h2, w2 = o_ref.shape[1], o_ref.shape[2]

    # ---- W interpolation: one fused matmul over all T*H rows -------------
    x2 = x_ref[...].reshape(t * h, w)                         # collapse leading dims
    tmp = jnp.dot(x2, awt_ref[...],
                  preferred_element_type=jnp.float32)          # (T*H, 2W) f32
    tmp = tmp.reshape(t, h, w2)                                # (T, H, 2W)

    # ---- H interpolation: single batched contraction over the batch ------
    ah_b = jnp.broadcast_to(ah_ref[...], (t, h2, h))           # hoisted, once/step
    out = jnp.einsum('toh,thw->tow', ah_b, tmp,
                     preferred_element_type=jnp.float32)        # (T, 2H, 2W)
    o_ref[...] = out.astype(o_ref.dtype)


def _pick_batch_tile(n_images: int, h: int, w: int, itemsize: int) -> int:
    """Largest divisor T of n_images whose (input + output) block stays within
    ~2 MiB and leaves the grid with >= 2 steps (keeps both v7x cores busy)."""
    budget = 2 * 1024 * 1024
    per_img = h * w * itemsize * 5            # input (1x) + output (4x)
    t_max = max(1, budget // per_img)
    if n_images >= 2:
        t_max = min(t_max, n_images // 2)     # keep grid length >= 2
    t_max = min(t_max, n_images)
    for t in range(int(t_max), 0, -1):
        if n_images % t == 0:
            return t
    return 1


@jax.jit
def upsampling_layer(x: jnp.ndarray) -> jnp.ndarray:
    """Equivalent of nn.Upsample(scale_factor=2, mode='bilinear',
    align_corners=True) applied to an NCHW tensor."""
    B, C, H, W = x.shape
    H2, W2 = 2 * H, 2 * W
    N = B * C

    a_h = jnp.asarray(_interp_matrix_np(H, H2))        # (2H, H) f32 constant
    a_w_t = jnp.asarray(_interp_matrix_np(W, W2).T)    # (W, 2W) f32 constant

    T = _pick_batch_tile(N, H, W, np.dtype(x.dtype).itemsize)
    x_stacked = x.reshape(N, H, W)

    # TODO(synk): for W < 64 a lane-dense packed layout (kron(I_G, A_w^T)) would
    # densify the output stores, but it needs an in-kernel relayout or HBM
    # transposes that cost more than they save at these sizes; skipped.
    out = pl.pallas_call(
        _upsample_kernel,
        out_shape=jax.ShapeDtypeStruct((N, H2, W2), x.dtype),
        grid_spec=pltpu.PrefetchScalarGridSpec(
            num_scalar_prefetch=0,
            grid=(N // T,),
            in_specs=[
                pl.BlockSpec((T, H, W), lambda i: (i, 0, 0)),
                pl.BlockSpec((H2, H), lambda i: (0, 0)),
                pl.BlockSpec((W, W2), lambda i: (0, 0)),
            ],
            out_specs=pl.BlockSpec((T, H2, W2), lambda i: (i, 0, 0)),
        ),
        compiler_params=pltpu.CompilerParams(
            dimension_semantics=("parallel",),
            vmem_limit_bytes=32 * 1024 * 1024,
        ),
    )(x_stacked, a_h, a_w_t)

    return out.reshape(B, C, H2, W2)


def _reference_upsample_np(x: np.ndarray) -> np.ndarray:
    """NumPy reference replicating PyTorch bilinear, align_corners=True."""
    B, C, H, W = x.shape
    H_out, W_out = 2 * H, 2 * W
    sh = np.arange(H_out) * (H - 1) / (H_out - 1) if H > 1 else np.zeros(H_out)
    sw = np.arange(W_out) * (W - 1) / (W_out - 1) if W > 1 else np.zeros(W_out)
    h0 = np.clip(np.floor(sh).astype(np.int64), 0, H - 1)
    h1 = np.clip(h0 + 1, 0, H - 1)
    w0 = np.clip(np.floor(sw).astype(np.int64), 0, W - 1)
    w1 = np.clip(w0 + 1, 0, W - 1)
    fh = (sh - h0)[None, None, :, None]
    fw = (sw - w0)[None, None, None, :]
    x00 = x[:, :, h0][:, :, :, w0]
    x01 = x[:, :, h0][:, :, :, w1]
    x10 = x[:, :, h1][:, :, :, w0]
    x11 = x[:, :, h1][:, :, :, w1]
    return ((1 - fh) * (1 - fw) * x00 + (1 - fh) * fw * x01
            + fh * (1 - fw) * x10 + fh * fw * x11)


if __name__ == "__main__":
    key = jax.random.PRNGKey(0)
    B, C, H, W = 2, 4, 16, 16
    x = jax.random.normal(key, (B, C, H, W), dtype=jnp.float32)

    y = upsampling_layer(x)
    y = jax.block_until_ready(y)

    assert y.shape == (B, C, 2 * H, 2 * W), y.shape
    assert y.dtype == x.dtype

    y_ref = _reference_upsample_np(np.asarray(x))
    np.testing.assert_allclose(np.asarray(y), y_ref, rtol=1e-5, atol=1e-5)

    print("KERNEL_OK")
</pallas_src>

<mosaic_0001>
module attributes {stable_mosaic.version = 11 : i64} {
  func.func @_upsample_kernel(%arg0: i32, %arg1: memref<4x16x16xf32, #tpu.memory_space<vmem>>, %arg2: memref<32x16xf32, #tpu.memory_space<vmem>>, %arg3: memref<16x32xf32, #tpu.memory_space<vmem>>, %arg4: memref<4x32x32xf32, #tpu.memory_space<vmem>>) attributes {dimension_semantics = [#tpu.dimension_semantics<parallel>], iteration_bounds = array<i64: 2>, scalar_prefetch = 0 : i64, scratch_operands = 0 : i64, tpu.core_type = #tpu.core_type<tc>, window_params = [{transform_indices = @transform_0, window_bounds = array<i64: 4, 16, 16>}, {pipeline_mode = #tpu.pipeline_mode<synchronous>, transform_indices = @transform_1, window_bounds = array<i64: 32, 16>}, {pipeline_mode = #tpu.pipeline_mode<synchronous>, transform_indices = @transform_2, window_bounds = array<i64: 16, 32>}, {transform_indices = @transform_3, window_bounds = array<i64: 4, 32, 32>}]} {
    %c0 = arith.constant 0 : index
    %c0_0 = arith.constant 0 : index
    %c0_1 = arith.constant 0 : index
    %0 = vector.load %arg1[%c0, %c0_0, %c0_1] : memref<4x16x16xf32, #tpu.memory_space<vmem>>, vector<4x16x16xf32>
    %1 = vector.shape_cast %0 : vector<4x16x16xf32> to vector<64x16xf32>
    %c0_2 = arith.constant 0 : index
    %c0_3 = arith.constant 0 : index
    %2 = vector.load %arg3[%c0_2, %c0_3] : memref<16x32xf32, #tpu.memory_space<vmem>>, vector<16x32xf32>
    %cst = arith.constant dense<0.000000e+00> : vector<64x32xf32>
    %3 = tpu.matmul %1, %2, %cst {dimension_numbers = #tpu.dot_dimension_numbers<[1], [0], [0], [1], [0, 0, 1, 1], [], []>} : vector<64x16xf32>, vector<16x32xf32>, vector<64x32xf32> -> vector<64x32xf32>
    %4 = vector.shape_cast %3 : vector<64x32xf32> to vector<4x16x32xf32>
    %c0_4 = arith.constant 0 : index
    %c0_5 = arith.constant 0 : index
    %5 = vector.load %arg2[%c0_4, %c0_5] : memref<32x16xf32, #tpu.memory_space<vmem>>, vector<32x16xf32>
    %6 = vector.shape_cast %5 : vector<32x16xf32> to vector<1x32x16xf32>
    %7 = vector.broadcast %6 : vector<1x32x16xf32> to vector<4x32x16xf32>
    "tpu.trace_start"() <{level = 10 : i32, message = "toh,thw->tow"}> : () -> ()
    %cst_6 = arith.constant dense<0.000000e+00> : vector<4x32x32xf32>
    %8 = tpu.matmul %7, %4, %cst_6 {dimension_numbers = #tpu.dot_dimension_numbers<[2], [1], [1], [2], [0, 0, 0, 1, 1, 2], [0], [0]>} : vector<4x32x16xf32>, vector<4x16x32xf32>, vector<4x32x32xf32> -> vector<4x32x32xf32>
    "tpu.trace_stop"() : () -> ()
    %c0_7 = arith.constant 0 : index
    %c0_8 = arith.constant 0 : index
    %c0_9 = arith.constant 0 : index
    %9 = vector.load %arg4[%c0_7, %c0_8, %c0_9] : memref<4x32x32xf32, #tpu.memory_space<vmem>>, vector<4x32x32xf32>
    tpu.vector_store %arg4[%c0_7, %c0_8, %c0_9], %8 {strides = array<i32>} : memref<4x32x32xf32, #tpu.memory_space<vmem>>, vector<4x32x32xf32>,
    return
  }
  func.func @transform_0(%arg0: i32) -> (i32, i32, i32) {
    %c0_i32 = arith.constant 0 : i32
    %c0_i32_0 = arith.constant 0 : i32
    %c0_i32_1 = arith.constant 0 : i32
    return %arg0, %c0_i32, %c0_i32_0 : i32, i32, i32
  }
  func.func @transform_1(%arg0: i32) -> (i32, i32) {
    %c0_i32 = arith.constant 0 : i32
    %c0_i32_0 = arith.constant 0 : i32
    %c0_i32_1 = arith.constant 0 : i32
    return %c0_i32, %c0_i32_0 : i32, i32
  }
  func.func @transform_2(%arg0: i32) -> (i32, i32) {
    %c0_i32 = arith.constant 0 : i32
    %c0_i32_0 = arith.constant 0 : i32
    %c0_i32_1 = arith.constant 0 : i32
    return %c0_i32, %c0_i32_0 : i32, i32
  }
  func.func @transform_3(%arg0: i32) -> (i32, i32, i32) {
    %c0_i32 = arith.constant 0 : i32
    %c0_i32_0 = arith.constant 0 : i32
    %c0_i32_1 = arith.constant 0 : i32
    return %arg0, %c0_i32, %c0_i32_0 : i32, i32, i32
  }
}

</mosaic_0001>

<llo_original>
// kernel: upsampling_layer.1
$region0: #{upsampling_layer.1}
  #allocation0 [shape = 'u32[]', space=smem, size = 0x4, offset = 0x4, fixed_abs, tag = 'smem constant byte address 0x4 - core index']
  #allocation1 [shape = 'u32[144,128]{1,0:T(1,128)}', space=vmem, size = 0x12000, scoped, tag = 'internal scratch']
  %s0 = inlined_call_operand.hbm [shape: f32[8,16,16], index: 0, kind: input, shape index: {}]
  %s1 = inlined_call_operand.hbm [shape: f32[32,16], index: 1, kind: input, shape index: {}]
  %s2 = inlined_call_operand.hbm [shape: f32[16,32], index: 2, kind: input, shape index: {}]
  %s3 = inlined_call_operand.hbm [shape: f32[8,32,32], index: 3, kind: output, shape index: {}]
  %s4 = sld [smem:[#allocation0]]
  $region57: #{upsampling_layer.1} parent=0
    _
  %s6 = ssub.s32 1, %s4
  %s7 = scalar_select 0, %s6, %s4
  $region1: #{upsampling_layer.1} parent=0
    #allocation2 [shape = 'u8[65536]{0}', space=vmem, size = 0x10000, scoped, tag = 'input window, operand 0']
    #allocation3 [shape = 's32[2]{0}', space=sflag, size = 0x8, scoped, tag = 'scoped memory for upsampling_layer.1']
    #allocation4 [shape = 's32[2]{0}', space=sflag, size = 0x8, scoped, tag = 'scoped memory for upsampling_layer.1']
    #allocation5 [shape = 'u8[16384]{0}', space=vmem, size = 0x4000, scoped, tag = 'input window, operand 1, single buffered']
    #allocation6 [shape = 's32[1]{0}', space=sflag, size = 0x4, scoped, tag = 'scoped memory for upsampling_layer.1']
    #allocation7 [shape = 'u8[8192]{0}', space=vmem, size = 0x2000, scoped, tag = 'input window, operand 2, single buffered']
    #allocation8 [shape = 'u8[131072]{0}', space=vmem, size = 0x20000, scoped, tag = 'output window, operand 0']
    %8 = vsyncpa [#allocation3], 0
    %s9 = scalar_lea.sflag [#allocation3], 1
    %10 = vsyncpa %s9, 0
    %11 = vsyncpa [#allocation6], 0
    %12 = vsyncpa [#allocation4], 0
    %s13 = scalar_lea.sflag [#allocation4], 1
    %14 = vsyncpa %s13, 0
    loop: start=0, step=1, limit=4
    $region2: #{upsampling_layer.1} parent=1 // loop_pre_header
      _
    $region3: #{upsampling_layer.1} parent=1 // loop_header
      %s16 = sphi 0, %s20
      %p17 = scmp.ge.s32.totalorder %s16, 4
      %s26 = sphi 0, %s28
      %s29 = sphi 0, %s26
      %s30 = sphi 0, %s29
      %s46 = sphi 0, %s30
      %s50 = sphi 0, %s50
      %s52 = sphi 0, %s50
      %s53 = sphi 0, %s52
      %s67 = sphi 0, %s53
      %s71 = sphi 0, %s71
      %s73 = sphi 0, %s71
      %s74 = sphi 0, %s73
      %s88 = sphi 0, %s74
      %s94 = sphi 0, %s96
      %s97 = sphi 0, %s94
      %s98 = sphi 0, %s97
      %s114 = sphi 0, %s98
    $region4: #{upsampling_layer.1} parent=1 // loop_header_branch
      %19 = sbr.rel (%p17) target = $region8
    $region5: #{upsampling_layer.1} parent=1 // loop_body
      %s21 = ssub.s32 %s16, 1
      %s22 = ssub.s32 %s16, 2
      %s23 = sadd.s32 %s16, 1
      %s24 = ssub.s32 %s16, %s23
      %p25 = scmp.eq.s32.totalorder %s24, 0
      %s27 = sadd.s32 %s26, 1
      %s28 = scalar_select %p25, %s26, %s27
      %p31 = pneg %p25
      %p32 = scmp.eq.s32.totalorder %s16, 1
      %p33 = por %p31, %p32
      %p34 = scmp.ne.s32.totalorder %s26, %s29
      %p35 = scmp.eq.s32.totalorder %s16, 0
      %p36 = por %p34, %p35
      %p37 = scmp.ne.s32.totalorder %s26, %s29
      %p38 = scmp.eq.s32.totalorder %s21, 1
      %p39 = por %p37, %p38
      %p40 = scmp.ne.s32.totalorder %s29, %s30
      %p41 = scmp.eq.s32.totalorder %s21, 0
      %p42 = por %p40, %p41
      %p43 = scmp.ne.s32.totalorder %s29, %s30
      %p44 = scmp.eq.s32.totalorder %s22, 1
      %p45 = por %p43, %p44
      %p47 = scmp.ne.s32.totalorder %s30, %s46
      %p48 = scmp.eq.s32.totalorder %s22, 0
      %p49 = por %p47, %p48
      %s51 = sadd.s32 %s50, 1
      %p54 = scmp.eq.s32.totalorder %s16, 1
      %p55 = scmp.ne.s32.totalorder %s50, %s52
      %p56 = scmp.eq.s32.totalorder %s16, 0
      %p57 = por %p55, %p56
      %p58 = scmp.ne.s32.totalorder %s50, %s52
      %p59 = scmp.eq.s32.totalorder %s21, 1
      %p60 = por %p58, %p59
      %p61 = scmp.ne.s32.totalorder %s52, %s53
      %p62 = scmp.eq.s32.totalorder %s21, 0
      %p63 = por %p61, %p62
      %p64 = scmp.ne.s32.totalorder %s52, %s53
      %p65 = scmp.eq.s32.totalorder %s22, 1
      %p66 = por %p64, %p65
      %p68 = scmp.ne.s32.totalorder %s53, %s67
      %p69 = scmp.eq.s32.totalorder %s22, 0
      %p70 = por %p68, %p69
      %s72 = sadd.s32 %s71, 1
      %p75 = scmp.eq.s32.totalorder %s16, 1
      %p76 = scmp.ne.s32.totalorder %s71, %s73
      %p77 = scmp.eq.s32.totalorder %s16, 0
      %p78 = por %p76, %p77
      %p79 = scmp.ne.s32.totalorder %s71, %s73
      %p80 = scmp.eq.s32.totalorder %s21, 1
      %p81 = por %p79, %p80
      %p82 = scmp.ne.s32.totalorder %s73, %s74
      %p83 = scmp.eq.s32.totalorder %s21, 0
      %p84 = por %p82, %p83
      %p85 = scmp.ne.s32.totalorder %s73, %s74
      %p86 = scmp.eq.s32.totalorder %s22, 1
      %p87 = por %p85, %p86
      %p89 = scmp.ne.s32.totalorder %s74, %s88
      %p90 = scmp.eq.s32.totalorder %s22, 0
      %p91 = por %p89, %p90
      %s92 = ssub.s32 %s16, %s23
      %p93 = scmp.eq.s32.totalorder %s92, 0
      %s95 = sadd.s32 %s94, 1
      %s96 = scalar_select %p93, %s94, %s95
      %p99 = pneg %p93
      %p100 = scmp.eq.s32.totalorder %s16, 1
      %p101 = por %p99, %p100
      %p102 = scmp.ne.s32.totalorder %s94, %s97
      %p103 = scmp.eq.s32.totalorder %s16, 0
      %p104 = por %p102, %p103
      %p105 = scmp.ne.s32.totalorder %s94, %s97
      %p106 = scmp.eq.s32.totalorder %s21, 1
      %p107 = por %p105, %p106
      %p108 = scmp.ne.s32.totalorder %s97, %s98
      %p109 = scmp.eq.s32.totalorder %s21, 0
      %p110 = por %p108, %p109
      %p111 = scmp.ne.s32.totalorder %s97, %s98
      %p112 = scmp.eq.s32.totalorder %s22, 1
      %p113 = por %p111, %p112
      %p115 = scmp.ne.s32.totalorder %s98, %s114
      %p116 = scmp.eq.s32.totalorder %s22, 0
      %p117 = por %p115, %p116
      %p118 = scmp.le.s32.totalorder 1, %s16
      %p119 = scmp.lt.s32.totalorder %s16, 3
      %p120 = pnand %p118, %p119
      %p121 = pneg %p120
      // Predicated region
      $region9: #{upsampling_layer.1} parent=5 // pred_check
        _
      $region10: #{upsampling_layer.1} parent=5 // pred_check_branch
        %123 = sbr.rel (%p120) target = $region12
      $region11: #{upsampling_layer.1} parent=5 // pred_region
        %s124 = ssub.s32 %s16, 1
        // Predicated region
        $region13: #{upsampling_layer.1} parent=11 // pred_check
          %p125 = pneg %p63
        $region14: #{upsampling_layer.1} parent=11 // pred_check_branch
          %127 = sbr.rel (%p125) target = $region16
        $region15: #{upsampling_layer.1} parent=11 // pred_region
          %s129 = ssub.s32 512, 512
          %130 = vsyncadd [#allocation6], %s129
          %s131 = sshll.u32 [#allocation5], 4
          %s132 = int_to_ptr.vmem [resolvable:$true] %s131
          %137 = dma.hbm_to_vmem [thread:$0]  %s1, 512, %s132, [#allocation6], 128, 128, 8
        $region16: #{upsampling_layer.1} parent=11 // pred_fallthru
          _
        // Predicated region
        $region17: #{upsampling_layer.1} parent=11 // pred_check
          %p138 = pneg %p84
        $region18: #{upsampling_layer.1} parent=11 // pred_check_branch
          %140 = sbr.rel (%p138) target = $region20
        $region19: #{upsampling_layer.1} parent=11 // pred_region
          %s142 = ssub.s32 256, 256
          %143 = vsyncadd [#allocation6], %s142
          %s144 = sshll.u32 [#allocation7], 4
          %s145 = int_to_ptr.vmem [resolvable:$true] %s144
          %150 = dma.hbm_to_vmem [thread:$0]  %s2, 256, %s145, [#allocation6], 128, 128, 8
        $region20: #{upsampling_layer.1} parent=11 // pred_fallthru
          _
      $region12: #{upsampling_layer.1} parent=5 // pred_fallthru
        _
      %p151 = scmp.lt.s32.totalorder %s16, 2
      // Predicated region
      $region21: #{upsampling_layer.1} parent=5 // pred_check
        %p152 = pneg %p151
      $region22: #{upsampling_layer.1} parent=5 // pred_check_branch
        %154 = sbr.rel (%p152) target = $region24
      $region23: #{upsampling_layer.1} parent=5 // pred_region
        // Predicated region
        $region25: #{upsampling_layer.1} parent=23 // pred_check
          %p155 = pneg %p36
        $region26: #{upsampling_layer.1} parent=23 // pred_check_branch
          %157 = sbr.rel (%p155) target = $region28
        $region27: #{upsampling_layer.1} parent=23 // pred_region
          %s158 = sand.u32 %s26, 1
          %s159 = scalar_lea.sflag [#allocation3], %s158
          %s160 = sand.u32 %s26, 1
          %s161 = smul.addr %s160, 64
          %s162 = scalar_lea.vmem [#allocation2], %s161
          %s163 = smul.u32 4, %s16
          %s165 = ssub.s32 1024, 1024
          %166 = vsyncadd %s159, %s165
          %s167 = smul.addr %s163, 2
          %s168 = smul.addr %s167, 128
          %s169 = scalar_lea.hbm %s0, %s168
          %s170 = sshll.u32 %s162, 4
          %s171 = int_to_ptr.vmem [resolvable:$true] %s170
          %176 = dma.hbm_to_vmem [thread:$0]  %s169, 1024, %s171, %s159, 128, 128, 8
        $region28: #{upsampling_layer.1} parent=23 // pred_fallthru
          _
      $region24: #{upsampling_layer.1} parent=5 // pred_fallthru
        _
      %p177 = scmp.le.s32.totalorder 1, %s16
      %p178 = scmp.lt.s32.totalorder %s16, 3
      %p179 = pnand %p177, %p178
      %p180 = pneg %p179
      // Predicated region
      $region29: #{upsampling_layer.1} parent=5 // pred_check
        _
      $region30: #{upsampling_layer.1} parent=5 // pred_check_branch
        %182 = sbr.rel (%p179) target = $region32
      $region31: #{upsampling_layer.1} parent=5 // pred_region
        %s183 = ssub.s32 %s16, 1
        %s184 = sand.u32 %s29, 1
        %s185 = scalar_lea.sflag [#allocation3], %s184
        %s186 = sand.u32 %s29, 1
        %s187 = smul.addr %s186, 64
        %s188 = scalar_lea.vmem [#allocation2], %s187
        // Predicated region
        $region33: #{upsampling_layer.1} parent=31 // pred_check
          %p189 = pneg %p42
        $region34: #{upsampling_layer.1} parent=31 // pred_check_branch
          %191 = sbr.rel (%p189) target = $region36
        $region35: #{upsampling_layer.1} parent=31 // pred_region
          %192 = dma.done %s185, 1024
        $region36: #{upsampling_layer.1} parent=31 // pred_fallthru
          _
        // Predicated region
        $region37: #{upsampling_layer.1} parent=31 // pred_check
          %p193 = pneg %p63
        $region38: #{upsampling_layer.1} parent=31 // pred_check_branch
          %195 = sbr.rel (%p193) target = $region40
        $region39: #{upsampling_layer.1} parent=31 // pred_region
          %196 = dma.done [#allocation6], 512
        $region40: #{upsampling_layer.1} parent=31 // pred_fallthru
          _
        // Predicated region
        $region41: #{upsampling_layer.1} parent=31 // pred_check
          %p197 = pneg %p84
        $region42: #{upsampling_layer.1} parent=31 // pred_check_branch
          %199 = sbr.rel (%p197) target = $region44
        $region43: #{upsampling_layer.1} parent=31 // pred_region
          %200 = dma.done [#allocation6], 256
        $region44: #{upsampling_layer.1} parent=31 // pred_fallthru
          _
        %s201 = sand.u32 %s29, 1
        %s202 = scalar_lea.sflag [#allocation3], %s201
        %s203 = sand.u32 %s29, 1
        %s204 = smul.addr %s203, 64
        %s205 = scalar_lea.vmem [#allocation2], %s204
        %p206 = pneg %p42
        %p207 = pneg %p39
        %p208 = pneg %p63
        %p209 = pneg %p60
        %p210 = pneg %p84
        %p211 = pneg %p81
        %p212 = pneg %p110
        %p213 = pneg %p107
        %s214 = sand.u32 %s97, 1
        %s215 = scalar_lea.sflag [#allocation4], %s214
        %s216 = sand.u32 %s97, 1
        %s217 = smul.addr %s216, 128
        %s218 = scalar_lea.vmem [#allocation8], %s217
        %s219 = smul.u32 4, %s21
        %s220 = smul.u32 4, %s21
        %v221 = vld [vmem:[%s188] sm:$0xff]
        %v222 = vld [vmem:[%s188 + $0x8] sm:$0xff]
        %v223 = vld [vmem:[%s188 + $0x10] sm:$0xff]
        %v224 = vld [vmem:[%s188 + $0x18] sm:$0xff]
        %v225 = vld [vmem:[%s188 + $0x20] sm:$0xff]
        %v226 = vld [vmem:[%s188 + $0x28] sm:$0xff]
        %v227 = vld [vmem:[%s188 + $0x30] sm:$0xff]
        %v228 = vld [vmem:[%s188 + $0x38] sm:$0xff]
        %v229 = vld [vmem:[#allocation7] sm:$0xff]
        %v230 = vld [vmem:[#allocation7 + $0x8] sm:$0xff]
        %vm231 = vcmask 130048
        %v233 = vsel %vm231, %v221, 0
        %v236 = vsel %vm231, %v222, 0
        %v239 = vsel %vm231, %v223, 0
        %v242 = vsel %vm231, %v224, 0
        %v245 = vsel %vm231, %v225, 0
        %v248 = vsel %vm231, %v226, 0
        %v251 = vsel %vm231, %v227, 0
        %v254 = vsel %vm231, %v228, 0
        %256 = vmatprep.subr.mxu0 0.0
        %257 = vmatpush1.msra.mxu0 0.0
        %258 = vmatprep.subr.mxu0 0.0
        %259 = vmatpush1.msra.mxu0 0.0
        %260 = vmatprep.subr.mxu0 0.0
        %261 = vmatpush1.msra.mxu0 0.0
        %262 = vmatprep.subr.mxu0 0.0
        %263 = vmatpush1.msra.mxu0 0.0
        %264 = vmatprep.subr.mxu0 0.0
        %265 = vmatpush1.msra.mxu0 0.0
        %266 = vmatprep.subr.mxu0 0.0
        %267 = vmatpush1.msra.mxu0 0.0
        %268 = vmatprep.subr.mxu0 0.0
        %269 = vmatpush1.msra.mxu0 0.0
        %270 = vmatprep.subr.mxu0 0.0
        %271 = vmatpush1.msra.mxu0 0.0
        %272 = vmatprep.subr.mxu0 0.0
        %273 = vmatpush1.msra.mxu0 0.0
        %274 = vmatprep.subr.mxu0 0.0
        %275 = vmatpush1.msra.mxu0 0.0
        %276 = vmatprep.subr.mxu0 0.0
        %277 = vmatpush1.msra.mxu0 0.0
        %278 = vmatprep.subr.mxu0 0.0
        %279 = vmatpush1.msra.mxu0 0.0
        %280 = vmatprep.subr.mxu0 0.0
        %281 = vmatpush1.msra.mxu0 0.0
        %282 = vmatprep.subr.mxu0 0.0
        %283 = vmatpush1.msra.mxu0 0.0
        %284 = vmatprep.subr.mxu0 0.0
        %285 = vmatpush1.msra.mxu0 %v230
        %286 = vmatprep.subr.mxu0 0.0
        %287 = vmatpush1.msra.mxu0 %v229
        %288 = vmatprep.subr.mxu0 0.0
        %289 = vmatpush2.msra.mxu0 0.0
        %290 = vmatprep.subr.mxu0 0.0
        %291 = vmatpush2.msra.mxu0 0.0
        %292 = vmatprep.subr.mxu0 0.0
        %293 = vmatpush2.msra.mxu0 0.0
        %294 = vmatprep.subr.mxu0 0.0
        %295 = vmatpush2.msra.mxu0 0.0
        %296 = vmatprep.subr.mxu0 0.0
        %297 = vmatpush2.msra.mxu0 0.0
        %298 = vmatprep.subr.mxu0 0.0
        %299 = vmatpush2.msra.mxu0 0.0
        %300 = vmatprep.subr.mxu0 0.0
        %301 = vmatpush2.msra.mxu0 0.0
        %302 = vmatprep.subr.mxu0 0.0
        %303 = vmatpush2.msra.mxu0 0.0
        %304 = vmatprep.subr.mxu0 0.0
        %305 = vmatpush2.msra.mxu0 0.0
        %306 = vmatprep.subr.mxu0 0.0
        %307 = vmatpush2.msra.mxu0 0.0
        %308 = vmatprep.subr.mxu0 0.0
        %309 = vmatpush2.msra.mxu0 0.0
        %310 = vmatprep.subr.mxu0 0.0
        %311 = vmatpush2.msra.mxu0 0.0
        %312 = vmatprep.subr.mxu0 0.0
        %313 = vmatpush2.msra.mxu0 0.0
        %314 = vmatprep.subr.mxu0 0.0
        %315 = vmatpush2.msra.mxu0 0.0
        %316 = vmatprep.subr.mxu0 0.0
        %317 = vmatpush2.msra.mxu0 0.0
        %318 = vmatprep.subr.mxu0 0.0
        %319 = vmatpush2.msra.mxu0 0.0
        %320 = vmatprep.mubr.f32.mxu0 0.0
        %321 = vmatmul.mubr.f32.gmra.mxu0 %v233
        %v322 = vpop.f32.mrf.mxu0
        %v323 = vadd.f32 0.0, %v322
        %v324 = vpop.f32.mrf.mxu0
        %325 = vmatprep.mubr.f32.mxu0 0.0
        %326 = vmatmul.mubr.f32.gmra.mxu0 %v236
        %v327 = vpop.f32.mrf.mxu0
        %v328 = vadd.f32 0.0, %v327
        %v329 = vpop.f32.mrf.mxu0
        %330 = vmatprep.mubr.f32.mxu0 0.0
        %331 = vmatmul.mubr.f32.gmra.mxu0 %v239
        %v332 = vpop.f32.mrf.mxu0
        %v333 = vadd.f32 0.0, %v332
        %v334 = vpop.f32.mrf.mxu0
        %335 = vmatprep.mubr.f32.mxu0 0.0
        %336 = vmatmul.mubr.f32.gmra.mxu0 %v242
        %v337 = vpop.f32.mrf.mxu0
        %v338 = vadd.f32 0.0, %v337
        %v339 = vpop.f32.mrf.mxu0
        %340 = vmatprep.mubr.f32.mxu0 0.0
        %341 = vmatmul.mubr.f32.gmra.mxu0 %v245
        %v342 = vpop.f32.mrf.mxu0
        %v343 = vadd.f32 0.0, %v342
        %v344 = vpop.f32.mrf.mxu0
        %345 = vmatprep.mubr.f32.mxu0 0.0
        %346 = vmatmul.mubr.f32.gmra.mxu0 %v248
        %v347 = vpop.f32.mrf.mxu0
        %v348 = vadd.f32 0.0, %v347
        %v349 = vpop.f32.mrf.mxu0
        %350 = vmatprep.mubr.f32.mxu0 0.0
        %351 = vmatmul.mubr.f32.gmra.mxu0 %v251
        %v352 = vpop.f32.mrf.mxu0
        %v353 = vadd.f32 0.0, %v352
        %v354 = vpop.f32.mrf.mxu0
        %355 = vmatprep.mubr.f32.mxu0 0.0
        %356 = vmatmul.mubr.f32.gmra.mxu0 %v254
        %v357 = vpop.f32.mrf.mxu0
        %v358 = vadd.f32 0.0, %v357
        %v359 = vpop.f32.mrf.mxu0
        %360 = vdwg.mxu0
        %v361 = vld [vmem:[#allocation5] sm:$0xff]
        %v362 = vld [vmem:[#allocation5 + $0x8] sm:$0xff]
        %v363 = vld [vmem:[#allocation5 + $0x10] sm:$0xff]
        %v364 = vld [vmem:[#allocation5 + $0x18] sm:$0xff]
        %v366 = vsel %vm231, %v361, 0
        %v369 = vsel %vm231, %v362, 0
        %v372 = vsel %vm231, %v363, 0
        %v375 = vsel %vm231, %v364, 0
        %377 = vmatprep.subr.mxu0 0.0
        %378 = vmatpush1.msra.mxu0 0.0
        %379 = vmatprep.subr.mxu0 0.0
        %380 = vmatpush1.msra.mxu0 0.0
        %381 = vmatprep.subr.mxu0 0.0
        %382 = vmatpush1.msra.mxu0 0.0
        %383 = vmatprep.subr.mxu0 0.0
        %384 = vmatpush1.msra.mxu0 0.0
        %385 = vmatprep.subr.mxu0 0.0
        %386 = vmatpush1.msra.mxu0 0.0
        %387 = vmatprep.subr.mxu0 0.0
        %388 = vmatpush1.msra.mxu0 0.0
        %389 = vmatprep.subr.mxu0 0.0
        %390 = vmatpush1.msra.mxu0 0.0
        %391 = vmatprep.subr.mxu0 0.0
        %392 = vmatpush1.msra.mxu0 0.0
        %393 = vmatprep.subr.mxu0 0.0
        %394 = vmatpush1.msra.mxu0 0.0
        %395 = vmatprep.subr.mxu0 0.0
        %396 = vmatpush1.msra.mxu0 0.0
        %397 = vmatprep.subr.mxu0 0.0
        %398 = vmatpush1.msra.mxu0 0.0
        %399 = vmatprep.subr.mxu0 0.0
        %400 = vmatpush1.msra.mxu0 0.0
        %401 = vmatprep.subr.mxu0 0.0
        %402 = vmatpush1.msra.mxu0 0.0
        %403 = vmatprep.subr.mxu0 0.0
        %404 = vmatpush1.msra.mxu0 0.0
        %405 = vmatprep.subr.mxu0 0.0
        %406 = vmatpush1.msra.mxu0 %v328
        %407 = vmatprep.subr.mxu0 0.0
        %408 = vmatpush1.msra.mxu0 %v323
        %409 = vmatprep.subr.mxu0 0.0
        %410 = vmatpush2.msra.mxu0 0.0
        %411 = vmatprep.subr.mxu0 0.0
        %412 = vmatpush2.msra.mxu0 0.0
        %413 = vmatprep.subr.mxu0 0.0
        %414 = vmatpush2.msra.mxu0 0.0
        %415 = vmatprep.subr.mxu0 0.0
        %416 = vmatpush2.msra.mxu0 0.0
        %417 = vmatprep.subr.mxu0 0.0
        %418 = vmatpush2.msra.mxu0 0.0
        %419 = vmatprep.subr.mxu0 0.0
        %420 = vmatpush2.msra.mxu0 0.0
        %421 = vmatprep.subr.mxu0 0.0
        %422 = vmatpush2.msra.mxu0 0.0
        %423 = vmatprep.subr.mxu0 0.0
        %424 = vmatpush2.msra.mxu0 0.0
        %425 = vmatprep.subr.mxu0 0.0
        %426 = vmatpush2.msra.mxu0 0.0
        %427 = vmatprep.subr.mxu0 0.0
        %428 = vmatpush2.msra.mxu0 0.0
        %429 = vmatprep.subr.mxu0 0.0
        %430 = vmatpush2.msra.mxu0 0.0
        %431 = vmatprep.subr.mxu0 0.0
        %432 = vmatpush2.msra.mxu0 0.0
        %433 = vmatprep.subr.mxu0 0.0
        %434 = vmatpush2.msra.mxu0 0.0
        %435 = vmatprep.subr.mxu0 0.0
        %436 = vmatpush2.msra.mxu0 0.0
        %437 = vmatprep.subr.mxu0 0.0
        %438 = vmatpush2.msra.mxu0 0.0
        %439 = vmatprep.subr.mxu0 0.0
        %440 = vmatpush2.msra.mxu0 0.0
        %441 = vmatprep.mubr.f32.mxu0 0.0
        %442 = vmatmul.mubr.f32.gmra.mxu0 %v366
        %v443 = vpop.f32.mrf.mxu0
        %v444 = vadd.f32 0.0, %v443
        %v445 = vpop.f32.mrf.mxu0
        %446 = vmatprep.mubr.f32.mxu0 0.0
        %447 = vmatmul.mubr.f32.gmra.mxu0 %v369
        %v448 = vpop.f32.mrf.mxu0
        %v449 = vadd.f32 0.0, %v448
        %v450 = vpop.f32.mrf.mxu0
        %451 = vmatprep.mubr.f32.mxu0 0.0
        %452 = vmatmul.mubr.f32.gmra.mxu0 %v372
        %v453 = vpop.f32.mrf.mxu0
        %v454 = vadd.f32 0.0, %v453
        %v455 = vpop.f32.mrf.mxu0
        %456 = vmatprep.mubr.f32.mxu0 0.0
        %457 = vmatmul.mubr.f32.gmra.mxu0 %v375
        %v458 = vpop.f32.mrf.mxu0
        %v459 = vadd.f32 0.0, %v458
        %v460 = vpop.f32.mrf.mxu0
        %461 = vdwg.mxu0
        %462 = vmatprep.subr.mxu0 0.0
        %463 = vmatpush1.msra.mxu0 0.0
        %464 = vmatprep.subr.mxu0 0.0
        %465 = vmatpush1.msra.mxu0 0.0
        %466 = vmatprep.subr.mxu0 0.0
        %467 = vmatpush1.msra.mxu0 0.0
        %468 = vmatprep.subr.mxu0 0.0
        %469 = vmatpush1.msra.mxu0 0.0
        %470 = vmatprep.subr.mxu0 0.0
        %471 = vmatpush1.msra.mxu0 0.0
        %472 = vmatprep.subr.mxu0 0.0
        %473 = vmatpush1.msra.mxu0 0.0
        %474 = vmatprep.subr.mxu0 0.0
        %475 = vmatpush1.msra.mxu0 0.0
        %476 = vmatprep.subr.mxu0 0.0
        %477 = vmatpush1.msra.mxu0 0.0
        %478 = vmatprep.subr.mxu0 0.0
        %479 = vmatpush1.msra.mxu0 0.0
        %480 = vmatprep.subr.mxu0 0.0
        %481 = vmatpush1.msra.mxu0 0.0
        %482 = vmatprep.subr.mxu0 0.0
        %483 = vmatpush1.msra.mxu0 0.0
        %484 = vmatprep.subr.mxu0 0.0
        %485 = vmatpush1.msra.mxu0 0.0
        %486 = vmatprep.subr.mxu0 0.0
        %487 = vmatpush1.msra.mxu0 0.0
        %488 = vmatprep.subr.mxu0 0.0
        %489 = vmatpush1.msra.mxu0 0.0
        %490 = vmatprep.subr.mxu0 0.0
        %491 = vmatpush1.msra.mxu0 %v338
        %492 = vmatprep.subr.mxu0 0.0
        %493 = vmatpush1.msra.mxu0 %v333
        %494 = vmatprep.subr.mxu0 0.0
        %495 = vmatpush2.msra.mxu0 0.0
        %496 = vmatprep.subr.mxu0 0.0
        %497 = vmatpush2.msra.mxu0 0.0
        %498 = vmatprep.subr.mxu0 0.0
        %499 = vmatpush2.msra.mxu0 0.0
        %500 = vmatprep.subr.mxu0 0.0
        %501 = vmatpush2.msra.mxu0 0.0
        %502 = vmatprep.subr.mxu0 0.0
        %503 = vmatpush2.msra.mxu0 0.0
        %504 = vmatprep.subr.mxu0 0.0
        %505 = vmatpush2.msra.mxu0 0.0
        %506 = vmatprep.subr.mxu0 0.0
        %507 = vmatpush2.msra.mxu0 0.0
        %508 = vmatprep.subr.mxu0 0.0
        %509 = vmatpush2.msra.mxu0 0.0
        %510 = vmatprep.subr.mxu0 0.0
        %511 = vmatpush2.msra.mxu0 0.0
        %512 = vmatprep.subr.mxu0 0.0
        %513 = vmatpush2.msra.mxu0 0.0
        %514 = vmatprep.subr.mxu0 0.0
        %515 = vmatpush2.msra.mxu0 0.0
        %516 = vmatprep.subr.mxu0 0.0
        %517 = vmatpush2.msra.mxu0 0.0
        %518 = vmatprep.subr.mxu0 0.0
        %519 = vmatpush2.msra.mxu0 0.0
        %520 = vmatprep.subr.mxu0 0.0
        %521 = vmatpush2.msra.mxu0 0.0
        %522 = vmatprep.subr.mxu0 0.0
        %523 = vmatpush2.msra.mxu0 0.0
        %524 = vmatprep.subr.mxu0 0.0
        %525 = vmatpush2.msra.mxu0 0.0
        %526 = vmatprep.mubr.f32.mxu0 0.0
        %527 = vmatmul.mubr.f32.gmra.mxu0 %v366
        %v528 = vpop.f32.mrf.mxu0
        %v529 = vadd.f32 0.0, %v528
        %v530 = vpop.f32.mrf.mxu0
        %531 = vmatprep.mubr.f32.mxu0 0.0
        %532 = vmatmul.mubr.f32.gmra.mxu0 %v369
        %v533 = vpop.f32.mrf.mxu0
        %v534 = vadd.f32 0.0, %v533
        %v535 = vpop.f32.mrf.mxu0
        %536 = vmatprep.mubr.f32.mxu0 0.0
        %537 = vmatmul.mubr.f32.gmra.mxu0 %v372
        %v538 = vpop.f32.mrf.mxu0
        %v539 = vadd.f32 0.0, %v538
        %v540 = vpop.f32.mrf.mxu0
        %541 = vmatprep.mubr.f32.mxu0 0.0
        %542 = vmatmul.mubr.f32.gmra.mxu0 %v375
        %v543 = vpop.f32.mrf.mxu0
        %v544 = vadd.f32 0.0, %v543
        %v545 = vpop.f32.mrf.mxu0
        %546 = vdwg.mxu0
        %547 = vmatprep.subr.mxu0 0.0
        %548 = vmatpush1.msra.mxu0 0.0
        %549 = vmatprep.subr.mxu0 0.0
        %550 = vmatpush1.msra.mxu0 0.0
        %551 = vmatprep.subr.mxu0 0.0
        %552 = vmatpush1.msra.mxu0 0.0
        %553 = vmatprep.subr.mxu0 0.0
        %554 = vmatpush1.msra.mxu0 0.0
        %555 = vmatprep.subr.mxu0 0.0
        %556 = vmatpush1.msra.mxu0 0.0
        %557 = vmatprep.subr.mxu0 0.0
        %558 = vmatpush1.msra.mxu0 0.0
        %559 = vmatprep.subr.mxu0 0.0
        %560 = vmatpush1.msra.mxu0 0.0
        %561 = vmatprep.subr.mxu0 0.0
        %562 = vmatpush1.msra.mxu0 0.0
        %563 = vmatprep.subr.mxu0 0.0
        %564 = vmatpush1.msra.mxu0 0.0
        %565 = vmatprep.subr.mxu0 0.0
        %566 = vmatpush1.msra.mxu0 0.0
        %567 = vmatprep.subr.mxu0 0.0
        %568 = vmatpush1.msra.mxu0 0.0
        %569 = vmatprep.subr.mxu0 0.0
        %570 = vmatpush1.msra.mxu0 0.0
        %571 = vmatprep.subr.mxu0 0.0
        %572 = vmatpush1.msra.mxu0 0.0
        %573 = vmatprep.subr.mxu0 0.0
        %574 = vmatpush1.msra.mxu0 0.0
        %575 = vmatprep.subr.mxu0 0.0
        %576 = vmatpush1.msra.mxu0 %v348
        %577 = vmatprep.subr.mxu0 0.0
        %578 = vmatpush1.msra.mxu0 %v343
        %579 = vmatprep.subr.mxu0 0.0
        %580 = vmatpush2.msra.mxu0 0.0
        %581 = vmatprep.subr.mxu0 0.0
        %582 = vmatpush2.msra.mxu0 0.0
        %583 = vmatprep.subr.mxu0 0.0
        %584 = vmatpush2.msra.mxu0 0.0
        %585 = vmatprep.subr.mxu0 0.0
        %586 = vmatpush2.msra.mxu0 0.0
        %587 = vmatprep.subr.mxu0 0.0
        %588 = vmatpush2.msra.mxu0 0.0
        %589 = vmatprep.subr.mxu0 0.0
        %590 = vmatpush2.msra.mxu0 0.0
        %591 = vmatprep.subr.mxu0 0.0
        %592 = vmatpush2.msra.mxu0 0.0
        %593 = vmatprep.subr.mxu0 0.0
        %594 = vmatpush2.msra.mxu0 0.0
        %595 = vmatprep.subr.mxu0 0.0
        %596 = vmatpush2.msra.mxu0 0.0
        %597 = vmatprep.subr.mxu0 0.0
        %598 = vmatpush2.msra.mxu0 0.0
        %599 = vmatprep.subr.mxu0 0.0
        %600 = vmatpush2.msra.mxu0 0.0
        %601 = vmatprep.subr.mxu0 0.0
        %602 = vmatpush2.msra.mxu0 0.0
        %603 = vmatprep.subr.mxu0 0.0
        %604 = vmatpush2.msra.mxu0 0.0
        %605 = vmatprep.subr.mxu0 0.0
        %606 = vmatpush2.msra.mxu0 0.0
        %607 = vmatprep.subr.mxu0 0.0
        %608 = vmatpush2.msra.mxu0 0.0
        %609 = vmatprep.subr.mxu0 0.0
        %610 = vmatpush2.msra.mxu0 0.0
        %611 = vmatprep.mubr.f32.mxu0 0.0
        %612 = vmatmul.mubr.f32.gmra.mxu0 %v366
        %v613 = vpop.f32.mrf.mxu0
        %v614 = vadd.f32 0.0, %v613
        %v615 = vpop.f32.mrf.mxu0
        %616 = vmatprep.mubr.f32.mxu0 0.0
        %617 = vmatmul.mubr.f32.gmra.mxu0 %v369
        %v618 = vpop.f32.mrf.mxu0
        %v619 = vadd.f32 0.0, %v618
        %v620 = vpop.f32.mrf.mxu0
        %621 = vmatprep.mubr.f32.mxu0 0.0
        %622 = vmatmul.mubr.f32.gmra.mxu0 %v372
        %v623 = vpop.f32.mrf.mxu0
        %v624 = vadd.f32 0.0, %v623
        %v625 = vpop.f32.mrf.mxu0
        %626 = vmatprep.mubr.f32.mxu0 0.0
        %627 = vmatmul.mubr.f32.gmra.mxu0 %v375
        %v628 = vpop.f32.mrf.mxu0
        %v629 = vadd.f32 0.0, %v628
        %v630 = vpop.f32.mrf.mxu0
        %631 = vdwg.mxu0
        %632 = vmatprep.subr.mxu0 0.0
        %633 = vmatpush1.msra.mxu0 0.0
        %634 = vmatprep.subr.mxu0 0.0
        %635 = vmatpush1.msra.mxu0 0.0
        %636 = vmatprep.subr.mxu0 0.0
        %637 = vmatpush1.msra.mxu0 0.0
        %638 = vmatprep.subr.mxu0 0.0
        %639 = vmatpush1.msra.mxu0 0.0
        %640 = vmatprep.subr.mxu0 0.0
        %641 = vmatpush1.msra.mxu0 0.0
        %642 = vmatprep.subr.mxu0 0.0
        %643 = vmatpush1.msra.mxu0 0.0
        %644 = vmatprep.subr.mxu0 0.0
        %645 = vmatpush1.msra.mxu0 0.0
        %646 = vmatprep.subr.mxu0 0.0
        %647 = vmatpush1.msra.mxu0 0.0
        %648 = vmatprep.subr.mxu0 0.0
        %649 = vmatpush1.msra.mxu0 0.0
        %650 = vmatprep.subr.mxu0 0.0
        %651 = vmatpush1.msra.mxu0 0.0
        %652 = vmatprep.subr.mxu0 0.0
        %653 = vmatpush1.msra.mxu0 0.0
        %654 = vmatprep.subr.mxu0 0.0
        %655 = vmatpush1.msra.mxu0 0.0
        %656 = vmatprep.subr.mxu0 0.0
        %657 = vmatpush1.msra.mxu0 0.0
        %658 = vmatprep.subr.mxu0 0.0
        %659 = vmatpush1.msra.mxu0 0.0
        %660 = vmatprep.subr.mxu0 0.0
        %661 = vmatpush1.msra.mxu0 %v358
        %662 = vmatprep.subr.mxu0 0.0
        %663 = vmatpush1.msra.mxu0 %v353
        %664 = vmatprep.subr.mxu0 0.0
        %665 = vmatpush2.msra.mxu0 0.0
        %666 = vmatprep.subr.mxu0 0.0
        %667 = vmatpush2.msra.mxu0 0.0
        %668 = vmatprep.subr.mxu0 0.0
        %669 = vmatpush2.msra.mxu0 0.0
        %670 = vmatprep.subr.mxu0 0.0
        %671 = vmatpush2.msra.mxu0 0.0
        %672 = vmatprep.subr.mxu0 0.0
        %673 = vmatpush2.msra.mxu0 0.0
        %674 = vmatprep.subr.mxu0 0.0
        %675 = vmatpush2.msra.mxu0 0.0
        %676 = vmatprep.subr.mxu0 0.0
        %677 = vmatpush2.msra.mxu0 0.0
        %678 = vmatprep.subr.mxu0 0.0
        %679 = vmatpush2.msra.mxu0 0.0
        %680 = vmatprep.subr.mxu0 0.0
        %681 = vmatpush2.msra.mxu0 0.0
        %682 = vmatprep.subr.mxu0 0.0
        %683 = vmatpush2.msra.mxu0 0.0
        %684 = vmatprep.subr.mxu0 0.0
        %685 = vmatpush2.msra.mxu0 0.0
        %686 = vmatprep.subr.mxu0 0.0
        %687 = vmatpush2.msra.mxu0 0.0
        %688 = vmatprep.subr.mxu0 0.0
        %689 = vmatpush2.msra.mxu0 0.0
        %690 = vmatprep.subr.mxu0 0.0
        %691 = vmatpush2.msra.mxu0 0.0
        %692 = vmatprep.subr.mxu0 0.0
        %693 = vmatpush2.msra.mxu0 0.0
        %694 = vmatprep.subr.mxu0 0.0
        %695 = vmatpush2.msra.mxu0 0.0
        %696 = vmatprep.mubr.f32.mxu0 0.0
        %697 = vmatmul.mubr.f32.gmra.mxu0 %v366
        %v698 = vpop.f32.mrf.mxu0
        %v699 = vadd.f32 0.0, %v698
        %v700 = vpop.f32.mrf.mxu0
        %701 = vmatprep.mubr.f32.mxu0 0.0
        %702 = vmatmul.mubr.f32.gmra.mxu0 %v369
        %v703 = vpop.f32.mrf.mxu0
        %v704 = vadd.f32 0.0, %v703
        %v705 = vpop.f32.mrf.mxu0
        %706 = vmatprep.mubr.f32.mxu0 0.0
        %707 = vmatmul.mubr.f32.gmra.mxu0 %v372
        %v708 = vpop.f32.mrf.mxu0
        %v709 = vadd.f32 0.0, %v708
        %v710 = vpop.f32.mrf.mxu0
        %711 = vmatprep.mubr.f32.mxu0 0.0
        %712 = vmatmul.mubr.f32.gmra.mxu0 %v375
        %v713 = vpop.f32.mrf.mxu0
        %v714 = vadd.f32 0.0, %v713
        %v715 = vpop.f32.mrf.mxu0
        %716 = vdwg.mxu0
        %vm717 = vcmask 261120
        %718 = vst.msk [vmem:[%s218] sm:$0xff] %vm717, %v444
        %719 = vst.msk [vmem:[%s218 + $0x8] sm:$0xff] %vm717, %v449
        %720 = vst.msk [vmem:[%s218 + $0x10] sm:$0xff] %vm717, %v454
        %721 = vst.msk [vmem:[%s218 + $0x18] sm:$0xff] %vm717, %v459
        %722 = vst.msk [vmem:[%s218 + $0x20] sm:$0xff] %vm717, %v529
        %723 = vst.msk [vmem:[%s218 + $0x28] sm:$0xff] %vm717, %v534
        %724 = vst.msk [vmem:[%s218 + $0x30] sm:$0xff] %vm717, %v539
        %725 = vst.msk [vmem:[%s218 + $0x38] sm:$0xff] %vm717, %v544
        %726 = vst.msk [vmem:[%s218 + $0x40] sm:$0xff] %vm717, %v614
        %727 = vst.msk [vmem:[%s218 + $0x48] sm:$0xff] %vm717, %v619
        %728 = vst.msk [vmem:[%s218 + $0x50] sm:$0xff] %vm717, %v624
        %729 = vst.msk [vmem:[%s218 + $0x58] sm:$0xff] %vm717, %v629
        %730 = vst.msk [vmem:[%s218 + $0x60] sm:$0xff] %vm717, %v699
        %731 = vst.msk [vmem:[%s218 + $0x68] sm:$0xff] %vm717, %v704
        %732 = vst.msk [vmem:[%s218 + $0x70] sm:$0xff] %vm717, %v709
        %733 = vst.msk [vmem:[%s218 + $0x78] sm:$0xff] %vm717, %v714
        %s734 = sand.u32 %s97, 1
        %s735 = scalar_lea.sflag [#allocation4], %s734
        %s736 = sand.u32 %s97, 1
        %s737 = smul.addr %s736, 128
        %s738 = scalar_lea.vmem [#allocation8], %s737
        // Predicated region
        $region45: #{upsampling_layer.1} parent=31 // pred_check
          %p739 = pneg %p107
        $region46: #{upsampling_layer.1} parent=31 // pred_check_branch
          %741 = sbr.rel (%p739) target = $region48
        $region47: #{upsampling_layer.1} parent=31 // pred_region
          %s742 = smul.u32 4, %s21
          %s744 = ssub.s32 2048, 2048
          %745 = vsyncadd %s735, %s744
          %s746 = smul.addr %s742, 4
          %s747 = smul.addr %s746, 128
          %s748 = scalar_lea.hbm %s3, %s747
          %s749 = sshll.u32 %s738, 4
          %s750 = int_to_ptr.vmem [resolvable:$true] %s749
          %755 = dma.vmem_to_hbm [thread:$0]  %s750, 2048, %s748, %s735, 128, 128, 8
        $region48: #{upsampling_layer.1} parent=31 // pred_fallthru
          _
      $region32: #{upsampling_layer.1} parent=5 // pred_fallthru
        _
      %p756 = scmp.le.s32.totalorder 2, %s16
      // Predicated region
      $region49: #{upsampling_layer.1} parent=5 // pred_check
        %p757 = pneg %p756
      $region50: #{upsampling_layer.1} parent=5 // pred_check_branch
        %759 = sbr.rel (%p757) target = $region52
      $region51: #{upsampling_layer.1} parent=5 // pred_region
        %s760 = ssub.s32 %s16, 2
        // Predicated region
        $region53: #{upsampling_layer.1} parent=51 // pred_check
          %p761 = pneg %p113
        $region54: #{upsampling_layer.1} parent=51 // pred_check_branch
          %763 = sbr.rel (%p761) target = $region56
        $region55: #{upsampling_layer.1} parent=51 // pred_region
          %s764 = sand.u32 %s98, 1
          %s765 = scalar_lea.sflag [#allocation4], %s764
          %s766 = sand.u32 %s98, 1
          %s767 = smul.addr %s766, 128
          %s768 = scalar_lea.vmem [#allocation8], %s767
          %769 = dma.done %s765, 2048
        $region56: #{upsampling_layer.1} parent=51 // pred_fallthru
          _
      $region52: #{upsampling_layer.1} parent=5 // pred_fallthru
        _
    $region6: #{upsampling_layer.1} parent=1 // loop_footer
      %s20 = sadd.s32 1, %s16
    $region7: #{upsampling_layer.1} parent=1 // loop_footer_branch
      %15 = sbr.rel target = $region3
    $region8: #{upsampling_layer.1} parent=1 // loop_exit
      _
    %770 = vsyncpa [#allocation3], 1
    %s771 = scalar_lea.sflag [#allocation3], 1
    %772 = vsyncpa %s771, 1
    %773 = vsyncpa [#allocation6], 1
    %774 = vsyncpa [#allocation4], 1
    %s775 = scalar_lea.sflag [#allocation4], 1
    %776 = vsyncpa %s775, 1

</llo_original>
